<compile_context>
chip_gen: v5e
topology: v5e:2x2
jax: 0.10.0
libtpu: 0.0.40
codegen_flags: <defaults>
</compile_context>

<pallas_src>
import functools

import jax
import jax.numpy as jnp
import numpy as np
from jax import lax
from jax.experimental import pallas as pl
from jax.experimental.pallas import tpu as pltpu
from jax.scipy.linalg import block_diag


def _msa_kernel(x_ref, wqkv_ref, bqkv_ref, o_ref, *, n_heads, d_head, b_blk,
                seq_len):
    d = n_heads * d_head

    # ---- Fused block-diagonal QKV projection for every row in the block ----
    # (b_blk*S, D) @ (D, 3D): one MXU push with a D-wide contraction instead
    # of b_blk*H skinny (S, Dh) @ (Dh, 3Dh) matmuls.  Weights are
    # pre-transposed, pre-scaled (1/sqrt(Dh) folded into the q block), bf16.
    x2d = x_ref[...].reshape(b_blk * seq_len, d)
    qkv = jnp.dot(x2d.astype(jnp.bfloat16), wqkv_ref[...],
                  preferred_element_type=jnp.float32) + bqkv_ref[...]

    # ---- Per (batch row, head) attention ------------------------------------
    # TODO(synk): for large n_heads (>~8) switch this static unroll to
    # lax.fori_loop; for long S replace the materialized (S, S) scores with a
    # KV-tiled online-softmax loop (flash) to stay inside VMEM/vregs.
    for b in range(b_blk):
        r0 = b * seq_len
        for h in range(n_heads):
            c0 = h * d_head
            q = qkv[r0:r0 + seq_len, c0:c0 + d_head]          # already scaled
            k = qkv[r0:r0 + seq_len, d + c0:d + c0 + d_head]
            v = qkv[r0:r0 + seq_len, 2 * d + c0:2 * d + c0 + d_head]

            # scores = q @ k.T without materializing a transpose (f32).
            scores = lax.dot_general(q, k, (((1,), (1,)), ((), ())),
                                     preferred_element_type=jnp.float32)

            # softmax over last axis (== nn.Softmax(dim=-1)), exact divide.
            m = jnp.max(scores, axis=-1, keepdims=True)
            p = jnp.exp(scores - m)
            attn = p / jnp.sum(p, axis=-1, keepdims=True)

            out_h = jnp.dot(attn.astype(jnp.bfloat16), v.astype(jnp.bfloat16),
                            preferred_element_type=jnp.float32)
            # Direct slice store: no H-way concatenate, per-head live range.
            o_ref[b, :, c0:c0 + d_head] = out_h.astype(o_ref.dtype)


def my_msa_pallas(x, wq, bq, wk, bk, wv, bv, n_heads, *, b_blk=None):
    """x: (B, S, D) f32. wq/wk/wv: (H, Dh, Dh) (out,in), bq/bk/bv: (H, Dh)."""
    B, S, D = x.shape
    H = n_heads
    d_head = D // n_heads
    assert D == H * d_head
    scale = 1.0 / np.sqrt(d_head)

    # Batch block size: default = whole batch in one grid step (best on the
    # single-TensorCore v5e/v6e).  On v7x (2 TCs/chip) pass b_blk=ceil(B/2) so
    # both cores get a 'parallel' grid step.
    if b_blk is None:
        b_blk = B
    assert B % b_blk == 0, "batch must be divisible by the batch block size"

    # ---- wrapper-side weight prep (done once, free layout plumbing) --------
    #  * transpose nn.Linear weights so the kernel computes x @ W
    #  * fold 1/sqrt(Dh) into the q weights / bias
    #  * lay the H per-head (Dh, Dh) maps on a block diagonal so a single
    #    (D, 3D) matmul produces q/k/v for every head
    wq_t = jnp.swapaxes(wq, 1, 2) * scale            # (H, Dh, Dh)
    wk_t = jnp.swapaxes(wk, 1, 2)
    wv_t = jnp.swapaxes(wv, 1, 2)
    wq_bd = block_diag(*[wq_t[h] for h in range(H)])  # (D, D)
    wk_bd = block_diag(*[wk_t[h] for h in range(H)])
    wv_bd = block_diag(*[wv_t[h] for h in range(H)])
    wqkv = jnp.concatenate([wq_bd, wk_bd, wv_bd], axis=-1)      # (D, 3D)
    wqkv = wqkv.astype(jnp.bfloat16)                 # MXU-native operand
    bqkv = jnp.concatenate([(bq * scale).reshape(-1), bk.reshape(-1),
                            bv.reshape(-1)]).reshape(1, 3 * D)  # f32

    kernel = functools.partial(_msa_kernel, n_heads=H, d_head=d_head,
                               b_blk=b_blk, seq_len=S)

    x_spec = pl.BlockSpec((b_blk, S, D), lambda i: (i, 0, 0))
    # Constant block index -> fetched once, stays VMEM-resident across steps.
    # TODO(synk): pipeline_mode=pl.Buffered(1) would halve the weight buffers
    # once H*Dh grows (relevant for v7x's 32 MiB scoped-VMEM default).
    w_spec = pl.BlockSpec((D, 3 * D), lambda i: (0, 0))
    b_spec = pl.BlockSpec((1, 3 * D), lambda i: (0, 0))
    o_spec = pl.BlockSpec((b_blk, S, D), lambda i: (i, 0, 0))

    out = pl.pallas_call(
        kernel,
        out_shape=jax.ShapeDtypeStruct((B, S, D), x.dtype),
        grid_spec=pltpu.PrefetchScalarGridSpec(
            num_scalar_prefetch=0,
            grid=(B // b_blk,),
            in_specs=[x_spec, w_spec, b_spec],
            out_specs=o_spec,
        ),
        compiler_params=pltpu.CompilerParams(
            dimension_semantics=("parallel",),        # batch axis -> megacore
            vmem_limit_bytes=32 * 1024 * 1024,        # explicit, with headroom
        ),
    )(x, wqkv, bqkv)

    return out                                        # (B, S, D)


def my_msa_ref(x, wq, bq, wk, bk, wv, bv, n_heads):
    """Pure-JAX f32 reference mirroring the PyTorch loop semantics."""
    B, S, D = x.shape
    d_head = D // n_heads
    outs = []
    for b in range(B):
        head_outs = []
        for h in range(n_heads):
            seq = x[b, :, h * d_head:(h + 1) * d_head]
            q = seq @ wq[h].T + bq[h]
            k = seq @ wk[h].T + bk[h]
            v = seq @ wv[h].T + bv[h]
            attn = jax.nn.softmax(q @ k.T / (d_head ** 0.5), axis=-1)
            head_outs.append(attn @ v)
        outs.append(jnp.concatenate(head_outs, axis=-1))
    return jnp.stack(outs, axis=0)


if __name__ == "__main__":
    key = jax.random.PRNGKey(0)
    B, S, D, H = 2, 8, 32, 2
    Dh = D // H

    ks = jax.random.split(key, 7)
    x = jax.random.normal(ks[0], (B, S, D), dtype=jnp.float32)
    # Synthetic parameters with nn.Linear(d_head, d_head) shapes / init range.
    scale = 1.0 / np.sqrt(Dh)
    wq = jax.random.uniform(ks[1], (H, Dh, Dh), jnp.float32, -scale, scale)
    bq = jax.random.uniform(ks[2], (H, Dh), jnp.float32, -scale, scale)
    wk = jax.random.uniform(ks[3], (H, Dh, Dh), jnp.float32, -scale, scale)
    bk = jax.random.uniform(ks[4], (H, Dh), jnp.float32, -scale, scale)
    wv = jax.random.uniform(ks[5], (H, Dh, Dh), jnp.float32, -scale, scale)
    bv = jax.random.uniform(ks[6], (H, Dh), jnp.float32, -scale, scale)

    out = my_msa_pallas(x, wq, bq, wk, bk, wv, bv, H)
    out = jax.block_until_ready(out)

    ref = my_msa_ref(x, wq, bq, wk, bk, wv, bv, H)
    # Loosened tolerance: MXU operands are bf16 (f32 accumulate, f32 softmax),
    # and 1/sqrt(Dh) is folded into Wq/bq (different rounding order).
    np.testing.assert_allclose(np.asarray(out), np.asarray(ref),
                               rtol=3e-2, atol=3e-2)
    print("KERNEL_OK")
</pallas_src>

<mosaic_0001>
module attributes {stable_mosaic.version = 11 : i64} {
  func.func @_msa_kernel(%arg0: i32, %arg1: memref<2x8x32xf32, #tpu.memory_space<vmem>>, %arg2: memref<32x96xbf16, #tpu.memory_space<vmem>>, %arg3: memref<1x96xf32, #tpu.memory_space<vmem>>, %arg4: memref<2x8x32xf32, #tpu.memory_space<vmem>>) attributes {dimension_semantics = [#tpu.dimension_semantics<parallel>], iteration_bounds = array<i64: 1>, scalar_prefetch = 0 : i64, scratch_operands = 0 : i64, tpu.core_type = #tpu.core_type<tc>, window_params = [{transform_indices = @transform_0, window_bounds = array<i64: 2, 8, 32>}, {pipeline_mode = #tpu.pipeline_mode<synchronous>, transform_indices = @transform_1, window_bounds = array<i64: 32, 96>}, {pipeline_mode = #tpu.pipeline_mode<synchronous>, transform_indices = @transform_2, window_bounds = array<i64: 1, 96>}, {transform_indices = @transform_3, window_bounds = array<i64: 2, 8, 32>}]} {
    %c0 = arith.constant 0 : index
    %c0_0 = arith.constant 0 : index
    %c0_1 = arith.constant 0 : index
    %0 = vector.load %arg1[%c0, %c0_0, %c0_1] : memref<2x8x32xf32, #tpu.memory_space<vmem>>, vector<2x8x32xf32>
    %1 = vector.shape_cast %0 : vector<2x8x32xf32> to vector<16x32xf32>
    %2 = arith.truncf %1 : vector<16x32xf32> to vector<16x32xbf16>
    %c0_2 = arith.constant 0 : index
    %c0_3 = arith.constant 0 : index
    %3 = vector.load %arg2[%c0_2, %c0_3] : memref<32x96xbf16, #tpu.memory_space<vmem>>, vector<32x96xbf16>
    %cst = arith.constant dense<0.000000e+00> : vector<16x96xf32>
    %4 = tpu.matmul %2, %3, %cst {dimension_numbers = #tpu.dot_dimension_numbers<[1], [0], [0], [1], [0, 0, 1, 1], [], []>} : vector<16x32xbf16>, vector<32x96xbf16>, vector<16x96xf32> -> vector<16x96xf32>
    %c0_4 = arith.constant 0 : index
    %c0_5 = arith.constant 0 : index
    %5 = vector.load %arg3[%c0_4, %c0_5] : memref<1x96xf32, #tpu.memory_space<vmem>>, vector<1x96xf32>
    %6 = vector.broadcast %5 : vector<1x96xf32> to vector<16x96xf32>
    %7 = arith.addf %4, %6 : vector<16x96xf32>
    %8 = vector.extract_strided_slice %7 {offsets = [0, 0], sizes = [8, 16], strides = [1, 1]} : vector<16x96xf32> to vector<8x16xf32>
    %9 = vector.extract_strided_slice %7 {offsets = [0, 32], sizes = [8, 16], strides = [1, 1]} : vector<16x96xf32> to vector<8x16xf32>
    %10 = vector.extract_strided_slice %7 {offsets = [0, 64], sizes = [8, 16], strides = [1, 1]} : vector<16x96xf32> to vector<8x16xf32>
    %cst_6 = arith.constant dense<0.000000e+00> : vector<8x8xf32>
    %11 = tpu.matmul %8, %9, %cst_6 {dimension_numbers = #tpu.dot_dimension_numbers<[1], [1], [0], [0], [0, 0, 1, 0], [], []>} : vector<8x16xf32>, vector<8x16xf32>, vector<8x8xf32> -> vector<8x8xf32>
    %cst_7 = arith.constant dense<0xFF800000> : vector<8xf32>
    %12 = vector.multi_reduction <maximumf>, %11, %cst_7 [1] : vector<8x8xf32> to vector<8xf32>
    %13 = vector.shape_cast %12 : vector<8xf32> to vector<8x1xf32>
    %14 = vector.broadcast %13 : vector<8x1xf32> to vector<8x8xf32>
    %15 = arith.subf %11, %14 : vector<8x8xf32>
    %16 = math.exp %15 : vector<8x8xf32>
    %cst_8 = arith.constant dense<0.000000e+00> : vector<8xf32>
    %17 = vector.multi_reduction <add>, %16, %cst_8 [1] : vector<8x8xf32> to vector<8xf32>
    %18 = vector.shape_cast %17 : vector<8xf32> to vector<8x1xf32>
    %19 = vector.broadcast %18 : vector<8x1xf32> to vector<8x8xf32>
    %20 = arith.divf %16, %19 : vector<8x8xf32>
    %21 = arith.truncf %20 : vector<8x8xf32> to vector<8x8xbf16>
    %22 = arith.truncf %10 : vector<8x16xf32> to vector<8x16xbf16>
    %cst_9 = arith.constant dense<0.000000e+00> : vector<8x16xf32>
    %23 = tpu.matmul %21, %22, %cst_9 {dimension_numbers = #tpu.dot_dimension_numbers<[1], [0], [0], [1], [0, 0, 1, 1], [], []>} : vector<8x8xbf16>, vector<8x16xbf16>, vector<8x16xf32> -> vector<8x16xf32>
    %c0_10 = arith.constant 0 : index
    %c0_11 = arith.constant 0 : index
    %c0_12 = arith.constant 0 : index
    %24 = vector.load %arg4[%c0_10, %c0_11, %c0_12] : memref<2x8x32xf32, #tpu.memory_space<vmem>>, vector<1x8x16xf32>
    %25 = vector.shape_cast %24 : vector<1x8x16xf32> to vector<8x16xf32>
    %26 = vector.shape_cast %23 : vector<8x16xf32> to vector<1x8x16xf32>
    tpu.vector_store %arg4[%c0_10, %c0_11, %c0_12], %26 {strides = array<i32>} : memref<2x8x32xf32, #tpu.memory_space<vmem>>, vector<1x8x16xf32>,
    %27 = vector.extract_strided_slice %7 {offsets = [0, 16], sizes = [8, 16], strides = [1, 1]} : vector<16x96xf32> to vector<8x16xf32>
    %28 = vector.extract_strided_slice %7 {offsets = [0, 48], sizes = [8, 16], strides = [1, 1]} : vector<16x96xf32> to vector<8x16xf32>
    %29 = vector.extract_strided_slice %7 {offsets = [0, 80], sizes = [8, 16], strides = [1, 1]} : vector<16x96xf32> to vector<8x16xf32>
    %cst_13 = arith.constant dense<0.000000e+00> : vector<8x8xf32>
    %30 = tpu.matmul %27, %28, %cst_13 {dimension_numbers = #tpu.dot_dimension_numbers<[1], [1], [0], [0], [0, 0, 1, 0], [], []>} : vector<8x16xf32>, vector<8x16xf32>, vector<8x8xf32> -> vector<8x8xf32>
    %cst_14 = arith.constant dense<0xFF800000> : vector<8xf32>
    %31 = vector.multi_reduction <maximumf>, %30, %cst_14 [1] : vector<8x8xf32> to vector<8xf32>
    %32 = vector.shape_cast %31 : vector<8xf32> to vector<8x1xf32>
    %33 = vector.broadcast %32 : vector<8x1xf32> to vector<8x8xf32>
    %34 = arith.subf %30, %33 : vector<8x8xf32>
    %35 = math.exp %34 : vector<8x8xf32>
    %cst_15 = arith.constant dense<0.000000e+00> : vector<8xf32>
    %36 = vector.multi_reduction <add>, %35, %cst_15 [1] : vector<8x8xf32> to vector<8xf32>
    %37 = vector.shape_cast %36 : vector<8xf32> to vector<8x1xf32>
    %38 = vector.broadcast %37 : vector<8x1xf32> to vector<8x8xf32>
    %39 = arith.divf %35, %38 : vector<8x8xf32>
    %40 = arith.truncf %39 : vector<8x8xf32> to vector<8x8xbf16>
    %41 = arith.truncf %29 : vector<8x16xf32> to vector<8x16xbf16>
    %cst_16 = arith.constant dense<0.000000e+00> : vector<8x16xf32>
    %42 = tpu.matmul %40, %41, %cst_16 {dimension_numbers = #tpu.dot_dimension_numbers<[1], [0], [0], [1], [0, 0, 1, 1], [], []>} : vector<8x8xbf16>, vector<8x16xbf16>, vector<8x16xf32> -> vector<8x16xf32>
    %c0_17 = arith.constant 0 : index
    %c0_18 = arith.constant 0 : index
    %c16 = arith.constant 16 : index
    %43 = vector.load %arg4[%c0_17, %c0_18, %c16] : memref<2x8x32xf32, #tpu.memory_space<vmem>>, vector<1x8x16xf32>
    %44 = vector.shape_cast %43 : vector<1x8x16xf32> to vector<8x16xf32>
    %45 = vector.shape_cast %42 : vector<8x16xf32> to vector<1x8x16xf32>
    tpu.vector_store %arg4[%c0_17, %c0_18, %c16], %45 {strides = array<i32>} : memref<2x8x32xf32, #tpu.memory_space<vmem>>, vector<1x8x16xf32>,
    %46 = vector.extract_strided_slice %7 {offsets = [8, 0], sizes = [8, 16], strides = [1, 1]} : vector<16x96xf32> to vector<8x16xf32>
    %47 = vector.extract_strided_slice %7 {offsets = [8, 32], sizes = [8, 16], strides = [1, 1]} : vector<16x96xf32> to vector<8x16xf32>
    %48 = vector.extract_strided_slice %7 {offsets = [8, 64], sizes = [8, 16], strides = [1, 1]} : vector<16x96xf32> to vector<8x16xf32>
    %cst_19 = arith.constant dense<0.000000e+00> : vector<8x8xf32>
    %49 = tpu.matmul %46, %47, %cst_19 {dimension_numbers = #tpu.dot_dimension_numbers<[1], [1], [0], [0], [0, 0, 1, 0], [], []>} : vector<8x16xf32>, vector<8x16xf32>, vector<8x8xf32> -> vector<8x8xf32>
    %cst_20 = arith.constant dense<0xFF800000> : vector<8xf32>
    %50 = vector.multi_reduction <maximumf>, %49, %cst_20 [1] : vector<8x8xf32> to vector<8xf32>
    %51 = vector.shape_cast %50 : vector<8xf32> to vector<8x1xf32>
    %52 = vector.broadcast %51 : vector<8x1xf32> to vector<8x8xf32>
    %53 = arith.subf %49, %52 : vector<8x8xf32>
    %54 = math.exp %53 : vector<8x8xf32>
    %cst_21 = arith.constant dense<0.000000e+00> : vector<8xf32>
    %55 = vector.multi_reduction <add>, %54, %cst_21 [1] : vector<8x8xf32> to vector<8xf32>
    %56 = vector.shape_cast %55 : vector<8xf32> to vector<8x1xf32>
    %57 = vector.broadcast %56 : vector<8x1xf32> to vector<8x8xf32>
    %58 = arith.divf %54, %57 : vector<8x8xf32>
    %59 = arith.truncf %58 : vector<8x8xf32> to vector<8x8xbf16>
    %60 = arith.truncf %48 : vector<8x16xf32> to vector<8x16xbf16>
    %cst_22 = arith.constant dense<0.000000e+00> : vector<8x16xf32>
    %61 = tpu.matmul %59, %60, %cst_22 {dimension_numbers = #tpu.dot_dimension_numbers<[1], [0], [0], [1], [0, 0, 1, 1], [], []>} : vector<8x8xbf16>, vector<8x16xbf16>, vector<8x16xf32> -> vector<8x16xf32>
    %c1 = arith.constant 1 : index
    %c0_23 = arith.constant 0 : index
    %c0_24 = arith.constant 0 : index
    %62 = vector.load %arg4[%c1, %c0_23, %c0_24] : memref<2x8x32xf32, #tpu.memory_space<vmem>>, vector<1x8x16xf32>
    %63 = vector.shape_cast %62 : vector<1x8x16xf32> to vector<8x16xf32>
    %64 = vector.shape_cast %61 : vector<8x16xf32> to vector<1x8x16xf32>
    tpu.vector_store %arg4[%c1, %c0_23, %c0_24], %64 {strides = array<i32>} : memref<2x8x32xf32, #tpu.memory_space<vmem>>, vector<1x8x16xf32>,
    %65 = vector.extract_strided_slice %7 {offsets = [8, 16], sizes = [8, 16], strides = [1, 1]} : vector<16x96xf32> to vector<8x16xf32>
    %66 = vector.extract_strided_slice %7 {offsets = [8, 48], sizes = [8, 16], strides = [1, 1]} : vector<16x96xf32> to vector<8x16xf32>
    %67 = vector.extract_strided_slice %7 {offsets = [8, 80], sizes = [8, 16], strides = [1, 1]} : vector<16x96xf32> to vector<8x16xf32>
    %cst_25 = arith.constant dense<0.000000e+00> : vector<8x8xf32>
    %68 = tpu.matmul %65, %66, %cst_25 {dimension_numbers = #tpu.dot_dimension_numbers<[1], [1], [0], [0], [0, 0, 1, 0], [], []>} : vector<8x16xf32>, vector<8x16xf32>, vector<8x8xf32> -> vector<8x8xf32>
    %cst_26 = arith.constant dense<0xFF800000> : vector<8xf32>
    %69 = vector.multi_reduction <maximumf>, %68, %cst_26 [1] : vector<8x8xf32> to vector<8xf32>
    %70 = vector.shape_cast %69 : vector<8xf32> to vector<8x1xf32>
    %71 = vector.broadcast %70 : vector<8x1xf32> to vector<8x8xf32>
    %72 = arith.subf %68, %71 : vector<8x8xf32>
    %73 = math.exp %72 : vector<8x8xf32>
    %cst_27 = arith.constant dense<0.000000e+00> : vector<8xf32>
    %74 = vector.multi_reduction <add>, %73, %cst_27 [1] : vector<8x8xf32> to vector<8xf32>
    %75 = vector.shape_cast %74 : vector<8xf32> to vector<8x1xf32>
    %76 = vector.broadcast %75 : vector<8x1xf32> to vector<8x8xf32>
    %77 = arith.divf %73, %76 : vector<8x8xf32>
    %78 = arith.truncf %77 : vector<8x8xf32> to vector<8x8xbf16>
    %79 = arith.truncf %67 : vector<8x16xf32> to vector<8x16xbf16>
    %cst_28 = arith.constant dense<0.000000e+00> : vector<8x16xf32>
    %80 = tpu.matmul %78, %79, %cst_28 {dimension_numbers = #tpu.dot_dimension_numbers<[1], [0], [0], [1], [0, 0, 1, 1], [], []>} : vector<8x8xbf16>, vector<8x16xbf16>, vector<8x16xf32> -> vector<8x16xf32>
    %c1_29 = arith.constant 1 : index
    %c0_30 = arith.constant 0 : index
    %c16_31 = arith.constant 16 : index
    %81 = vector.load %arg4[%c1_29, %c0_30, %c16_31] : memref<2x8x32xf32, #tpu.memory_space<vmem>>, vector<1x8x16xf32>
    %82 = vector.shape_cast %81 : vector<1x8x16xf32> to vector<8x16xf32>
    %83 = vector.shape_cast %80 : vector<8x16xf32> to vector<1x8x16xf32>
    tpu.vector_store %arg4[%c1_29, %c0_30, %c16_31], %83 {strides = array<i32>} : memref<2x8x32xf32, #tpu.memory_space<vmem>>, vector<1x8x16xf32>,
    return
  }
  func.func @transform_0(%arg0: i32) -> (i32, i32, i32) {
    %c0_i32 = arith.constant 0 : i32
    %c0_i32_0 = arith.constant 0 : i32
    %c0_i32_1 = arith.constant 0 : i32
    return %arg0, %c0_i32, %c0_i32_0 : i32, i32, i32
  }
  func.func @transform_1(%arg0: i32) -> (i32, i32) {
    %c0_i32 = arith.constant 0 : i32
    %c0_i32_0 = arith.constant 0 : i32
    %c0_i32_1 = arith.constant 0 : i32
    return %c0_i32, %c0_i32_0 : i32, i32
  }
  func.func @transform_2(%arg0: i32) -> (i32, i32) {
    %c0_i32 = arith.constant 0 : i32
    %c0_i32_0 = arith.constant 0 : i32
    %c0_i32_1 = arith.constant 0 : i32
    return %c0_i32, %c0_i32_0 : i32, i32
  }
  func.func @transform_3(%arg0: i32) -> (i32, i32, i32) {
    %c0_i32 = arith.constant 0 : i32
    %c0_i32_0 = arith.constant 0 : i32
    %c0_i32_1 = arith.constant 0 : i32
    return %arg0, %c0_i32, %c0_i32_0 : i32, i32, i32
  }
}

</mosaic_0001>

<llo_original>
// kernel: tpu_custom_call.1
$region0: #{tpu_custom_call.1}
  #allocation0 [shape = 'u32[]', space=smem, size = 0x4, offset = 0x4, fixed_abs, tag = 'smem constant byte address 0x4 - core index']
  #allocation1 [shape = 'u32[72,128]{1,0:T(1,128)}', space=vmem, size = 0x9000, scoped, tag = 'internal scratch']
  %s0 = inlined_call_operand.hbm [shape: f32[2,8,32], index: 0, kind: input, shape index: {}]
  %s1 = inlined_call_operand.hbm [shape: bf16[32,96], index: 1, kind: input, shape index: {}]
  %s2 = inlined_call_operand.vmem [shape: f32[1,96], index: 2, kind: input, shape index: {}]
  %s3 = inlined_call_operand.hbm [shape: f32[2,8,32], index: 3, kind: output, shape index: {}]
  %s4 = sld [smem:[#allocation0]]
  $region30: #{tpu_custom_call.1} parent=0
    _
  %s6 = ssub.s32 1, %s4
  %s7 = scalar_select 0, %s6, %s4
  $region1: #{tpu_custom_call.1} parent=0
    #allocation2 [shape = 'u8[8192]{0}', space=vmem, size = 0x2000, scoped, tag = 'input window, operand 0, single buffered']
    #allocation3 [shape = 's32[1]{0}', space=sflag, size = 0x4, scoped, tag = 'scoped memory for tpu_custom_call.1']
    #allocation4 [shape = 's32[1]{0}', space=sflag, size = 0x4, scoped, tag = 'scoped memory for tpu_custom_call.1']
    #allocation5 [shape = 'u8[8192]{0}', space=vmem, size = 0x2000, scoped, tag = 'input window, operand 1, single buffered']
    #allocation6 [shape = 's32[1]{0}', space=sflag, size = 0x4, scoped, tag = 'scoped memory for tpu_custom_call.1']
    #allocation7 [shape = 'u8[8192]{0}', space=vmem, size = 0x2000, scoped, tag = 'output window, operand 0, single buffered']
    %8 = vsyncpa [#allocation3], 0
    %9 = vsyncpa [#allocation6], 0
    %10 = vsyncpa [#allocation4], 0
    // Predicated region
    $region2: #{tpu_custom_call.1} parent=1 // pred_check
      _
    $region3: #{tpu_custom_call.1} parent=1 // pred_check_branch
      %12 = sbr.rel (0) target = $region5
    $region4: #{tpu_custom_call.1} parent=1 // pred_region
      %14 = vsyncadd [#allocation3], 0
      %s15 = sshll.u32 %s0, 4
      %s16 = int_to_ptr.hbm [resolvable:$true] %s15
      %s17 = sshll.u32 [#allocation2], 4
      %s18 = int_to_ptr.vmem [resolvable:$true] %s17
      %23 = dma.hbm_to_vmem [thread:$0]  %s16, 256, %s18, [#allocation3], 128, 128, 8
    $region5: #{tpu_custom_call.1} parent=1 // pred_fallthru
      _
    // Predicated region
    $region6: #{tpu_custom_call.1} parent=1 // pred_check
      _
    $region7: #{tpu_custom_call.1} parent=1 // pred_check_branch
      %25 = sbr.rel (0) target = $region9
    $region8: #{tpu_custom_call.1} parent=1 // pred_region
      %27 = vsyncadd [#allocation6], 0
      %s28 = sshll.u32 %s1, 4
      %s29 = int_to_ptr.hbm [resolvable:$true] %s28
      %s30 = sshll.u32 [#allocation5], 4
      %s31 = int_to_ptr.vmem [resolvable:$true] %s30
      %36 = dma.hbm_to_vmem [thread:$0]  %s29, 256, %s31, [#allocation6], 64, 64, 4
    $region9: #{tpu_custom_call.1} parent=1 // pred_fallthru
      _
    // Predicated region
    $region10: #{tpu_custom_call.1} parent=1 // pred_check
      _
    $region11: #{tpu_custom_call.1} parent=1 // pred_check_branch
      %38 = sbr.rel (0) target = $region13
    $region12: #{tpu_custom_call.1} parent=1 // pred_region
      _
    $region13: #{tpu_custom_call.1} parent=1 // pred_fallthru
      _
    // Predicated region
    $region14: #{tpu_custom_call.1} parent=1 // pred_check
      _
    $region15: #{tpu_custom_call.1} parent=1 // pred_check_branch
      %40 = sbr.rel (0) target = $region17
    $region16: #{tpu_custom_call.1} parent=1 // pred_region
      %42 = dma.done [#allocation3], 256
    $region17: #{tpu_custom_call.1} parent=1 // pred_fallthru
      _
    // Predicated region
    $region18: #{tpu_custom_call.1} parent=1 // pred_check
      _
    $region19: #{tpu_custom_call.1} parent=1 // pred_check_branch
      %44 = sbr.rel (0) target = $region21
    $region20: #{tpu_custom_call.1} parent=1 // pred_region
      %46 = dma.done [#allocation6], 256
    $region21: #{tpu_custom_call.1} parent=1 // pred_fallthru
      _
    %v48 = vld [vmem:[#allocation2] sm:$0xff]
    %v49 = vld [vmem:[#allocation2 + $0x8] sm:$0xff]
    %v50 = vpack.c.bf16 %v49, %v48
    %v51 = vld [vmem:[#allocation5] sm:$0xf]
    %v52 = vld [vmem:[#allocation5 + $0x4] sm:$0xf]
    %v53 = vld [vmem:[#allocation5 + $0x8] sm:$0xf]
    %v54 = vld [vmem:[#allocation5 + $0xc] sm:$0xf]
    %v55 = vld [vmem:[%s2] sm:$0x1]
    %v57 = vperm.slane %v55, 0
    %v63 = vunpack.c.l.b16 %v51
    %v64 = vunpack.c.l.b16 %v52
    %v65 = vunpack.c.l.b16 %v53
    %v66 = vunpack.c.l.b16 %v54
    %v67 = vpack.c.b16 %v64, %v63
    %v68 = vpack.c.b16 %v66, %v65
    %vm71 = vcmask 261120
    %v73 = vsel %vm71, %v50, 0
    %75 = vmatpush.bf16.msra.mxu0 0
    %76 = vmatpush.bf16.msra.mxu0 0
    %77 = vmatpush.bf16.msra.mxu0 0
    %78 = vmatpush.bf16.msra.mxu0 0
    %79 = vmatpush.bf16.msra.mxu0 0
    %80 = vmatpush.bf16.msra.mxu0 0
    %81 = vmatpush.bf16.msra.mxu0 %v68
    %82 = vmatpush.bf16.msra.mxu0 %v67
    %83 = vmatmul.bf16.gmra.mxu0 %v73
    %v84 = vpop.f32.mrf.mxu0
    %v85 = vadd.f32 %v57, %v84
    %v86 = vpop.f32.mrf.mxu0
    %v87 = vadd.f32 %v57, %v86
    %88 = vdwg.mxu0
    %90 = vrot.lane.b32.xlu0 %v85, 96
    %v91 = vpop.permute.xlu0 %90
    %vm92 = vcmask 130048
    %v93 = vsel %vm92, %v85, 0
    %v95 = vsel %vm92, %v91, 0
    %97 = vmatpush.xpose.msra.mxu0 0.0
    %98 = vmatpush.xpose.msra.mxu0 0.0
    %99 = vmatpush.xpose.msra.mxu0 0.0
    %100 = vmatpush.xpose.msra.mxu0 0.0
    %101 = vmatpush.xpose.msra.mxu0 0.0
    %102 = vmatpush.xpose.msra.mxu0 0.0
    %103 = vmatpush.xpose.msra.mxu0 0.0
    %104 = vmatpush.xpose.msra.mxu0 0.0
    %105 = vmatpush.xpose.msra.mxu0 0.0
    %106 = vmatpush.xpose.msra.mxu0 0.0
    %107 = vmatpush.xpose.msra.mxu0 0.0
    %108 = vmatpush.xpose.msra.mxu0 0.0
    %109 = vmatpush.xpose.msra.mxu0 0.0
    %110 = vmatpush.xpose.msra.mxu0 0.0
    %111 = vmatpush.xpose.msra.mxu0 0.0
    %112 = vmatpush.xpose.msra.mxu0 %v95
    %113 = vmatmul.f32.gmra.mxu0 %v93
    %v114 = vpop.f32.mrf.mxu0
    %v115 = vadd.f32 0.0, %v114
    %116 = vdwg.mxu0
    %vm117 = vcmask 64512
    %v118 = vsel %vm117, %v115, -inf
    %119 = vmax.xlane.f32.xlu0 %v118
    %v120 = vpop.xlane.xlu0 %119
    %v121 = vsub.f32 %v115, %v120
    %v122 = vmul.f32 %v121, 1.442695
    %v123 = vpow.pop %v122
    %v124 = vsel %vm117, %v123, 0.0
    %125 = vadd.xlane.f32.xlu0 %v124
    %v126 = vpop.xlane.xlu0 %125
    %v127 = vrcp.pop %v126
    %v128 = vmul.f32 %v126, %v127
    %v129 = vsub.f32 1.0, %v128
    %v130 = vmul.f32 %v127, %v129
    %v131 = vadd.f32 %v127, %v130
    %vm132 = vweird.f32 %v126
    %vm133 = vweird.f32 %v127
    %vm134 = vmor %vm132, %vm133
    %v135 = vsel %vm134, %v127, %v131
    %v136 = vand.u32 2147483647, %v126
    %vm137 = vcmp.eq.f32.partialorder %v136, 8.507059e+37
    %v138 = vand.u32 %v126, 2147483648
    %v139 = vor.u32 1.1754944e-38, %v138
    %v140 = vsel %vm137, %v139, %v135
    %v141 = vmul.f32 %v123, %v140
    %v142 = vpack.c.bf16 %v141, %v141
    %v143 = vpack.c.bf16 %v85, %v85
    %145 = vrot.lane.b32.xlu0 %v143, 64
    %v146 = vpop.permute.xlu0 %145
    %v148 = vsel %vm117, %v142, 0
    %vm150 = vcmask 1043456
    %v152 = vsel %vm150, %v146, 0
    %154 = vmatpush.bf16.msra.mxu0 0
    %155 = vmatpush.bf16.msra.mxu0 0
    %156 = vmatpush.bf16.msra.mxu0 0
    %157 = vmatpush.bf16.msra.mxu0 0
    %158 = vmatpush.bf16.msra.mxu0 0
    %159 = vmatpush.bf16.msra.mxu0 0
    %160 = vmatpush.bf16.msra.mxu0 0
    %161 = vmatpush.bf16.msra.mxu0 %v152
    %162 = vmatmul.bf16.gmra.mxu0 %v148
    %v163 = vpop.f32.mrf.mxu0
    %v164 = vadd.f32 0.0, %v163
    %v165 = vpop.f32.mrf.mxu0
    %166 = vdwg.mxu0
    %167 = vst.msk [vmem:[#allocation7] sm:$0xff] %vm92, %v164
    %168 = vrot.lane.b32.xlu0 %v85, 112
    %v169 = vpop.permute.xlu0 %168
    %170 = vrot.lane.b32.xlu0 %v85, 80
    %v171 = vpop.permute.xlu0 %170
    %v172 = vsel %vm92, %v169, 0
    %v174 = vsel %vm92, %v171, 0
    %176 = vmatpush.xpose.msra.mxu0 0.0
    %177 = vmatpush.xpose.msra.mxu0 0.0
    %178 = vmatpush.xpose.msra.mxu0 0.0
    %179 = vmatpush.xpose.msra.mxu0 0.0
    %180 = vmatpush.xpose.msra.mxu0 0.0
    %181 = vmatpush.xpose.msra.mxu0 0.0
    %182 = vmatpush.xpose.msra.mxu0 0.0
    %183 = vmatpush.xpose.msra.mxu0 0.0
    %184 = vmatpush.xpose.msra.mxu0 0.0
    %185 = vmatpush.xpose.msra.mxu0 0.0
    %186 = vmatpush.xpose.msra.mxu0 0.0
    %187 = vmatpush.xpose.msra.mxu0 0.0
    %188 = vmatpush.xpose.msra.mxu0 0.0
    %189 = vmatpush.xpose.msra.mxu0 0.0
    %190 = vmatpush.xpose.msra.mxu0 0.0
    %191 = vmatpush.xpose.msra.mxu0 %v174
    %192 = vmatmul.f32.gmra.mxu0 %v172
    %v193 = vpop.f32.mrf.mxu0
    %v194 = vadd.f32 0.0, %v193
    %195 = vdwg.mxu0
    %v196 = vsel %vm117, %v194, -inf
    %197 = vmax.xlane.f32.xlu0 %v196
    %v198 = vpop.xlane.xlu0 %197
    %v199 = vsub.f32 %v194, %v198
    %v200 = vmul.f32 %v199, 1.442695
    %v201 = vpow.pop %v200
    %v202 = vsel %vm117, %v201, 0.0
    %203 = vadd.xlane.f32.xlu0 %v202
    %v204 = vpop.xlane.xlu0 %203
    %v205 = vrcp.pop %v204
    %v206 = vmul.f32 %v204, %v205
    %v207 = vsub.f32 1.0, %v206
    %v208 = vmul.f32 %v205, %v207
    %v209 = vadd.f32 %v205, %v208
    %vm210 = vweird.f32 %v204
    %vm211 = vweird.f32 %v205
    %vm212 = vmor %vm210, %vm211
    %v213 = vsel %vm212, %v205, %v209
    %v214 = vand.u32 2147483647, %v204
    %vm215 = vcmp.eq.f32.partialorder %v214, 8.507059e+37
    %v216 = vand.u32 %v204, 2147483648
    %v217 = vor.u32 1.1754944e-38, %v216
    %v218 = vsel %vm215, %v217, %v213
    %v219 = vmul.f32 %v201, %v218
    %v220 = vpack.c.bf16 %v219, %v219
    %221 = vrot.lane.b32.xlu0 %v143, 48
    %v222 = vpop.permute.xlu0 %221
    %v224 = vsel %vm117, %v220, 0
    %v227 = vsel %vm150, %v222, 0
    %229 = vmatpush.bf16.msra.mxu0 0
    %230 = vmatpush.bf16.msra.mxu0 0
    %231 = vmatpush.bf16.msra.mxu0 0
    %232 = vmatpush.bf16.msra.mxu0 0
    %233 = vmatpush.bf16.msra.mxu0 0
    %234 = vmatpush.bf16.msra.mxu0 0
    %235 = vmatpush.bf16.msra.mxu0 0
    %236 = vmatpush.bf16.msra.mxu0 %v227
    %237 = vmatmul.bf16.gmra.mxu0 %v224
    %v238 = vpop.f32.mrf.mxu0
    %v239 = vadd.f32 0.0, %v238
    %v240 = vpop.f32.mrf.mxu0
    %241 = vdwg.mxu0
    %243 = vrot.lane.b32.xlu0 %v239, 16
    %v244 = vpop.permute.xlu0 %243
    %vm246 = vcmask 261248
    %247 = vst.msk [vmem:[#allocation7] sm:$0xff] %vm246, %v244
    %249 = vrot.lane.b32.xlu0 %v87, 96
    %v250 = vpop.permute.xlu0 %249
    %v251 = vsel %vm92, %v87, 0
    %v253 = vsel %vm92, %v250, 0
    %255 = vmatpush.xpose.msra.mxu0 0.0
    %256 = vmatpush.xpose.msra.mxu0 0.0
    %257 = vmatpush.xpose.msra.mxu0 0.0
    %258 = vmatpush.xpose.msra.mxu0 0.0
    %259 = vmatpush.xpose.msra.mxu0 0.0
    %260 = vmatpush.xpose.msra.mxu0 0.0
    %261 = vmatpush.xpose.msra.mxu0 0.0
    %262 = vmatpush.xpose.msra.mxu0 0.0
    %263 = vmatpush.xpose.msra.mxu0 0.0
    %264 = vmatpush.xpose.msra.mxu0 0.0
    %265 = vmatpush.xpose.msra.mxu0 0.0
    %266 = vmatpush.xpose.msra.mxu0 0.0
    %267 = vmatpush.xpose.msra.mxu0 0.0
    %268 = vmatpush.xpose.msra.mxu0 0.0
    %269 = vmatpush.xpose.msra.mxu0 0.0
    %270 = vmatpush.xpose.msra.mxu0 %v253
    %271 = vmatmul.f32.gmra.mxu0 %v251
    %v272 = vpop.f32.mrf.mxu0
    %v273 = vadd.f32 0.0, %v272
    %274 = vdwg.mxu0
    %v275 = vsel %vm117, %v273, -inf
    %276 = vmax.xlane.f32.xlu0 %v275
    %v277 = vpop.xlane.xlu0 %276
    %v278 = vsub.f32 %v273, %v277
    %v279 = vmul.f32 %v278, 1.442695
    %v280 = vpow.pop %v279
    %v281 = vsel %vm117, %v280, 0.0
    %282 = vadd.xlane.f32.xlu0 %v281
    %v283 = vpop.xlane.xlu0 %282
    %v284 = vrcp.pop %v283
    %v285 = vmul.f32 %v283, %v284
    %v286 = vsub.f32 1.0, %v285
    %v287 = vmul.f32 %v284, %v286
    %v288 = vadd.f32 %v284, %v287
    %vm289 = vweird.f32 %v283
    %vm290 = vweird.f32 %v284
    %vm291 = vmor %vm289, %vm290
    %v292 = vsel %vm291, %v284, %v288
    %v293 = vand.u32 2147483647, %v283
    %vm294 = vcmp.eq.f32.partialorder %v293, 8.507059e+37
    %v295 = vand.u32 %v283, 2147483648
    %v296 = vor.u32 1.1754944e-38, %v295
    %v297 = vsel %vm294, %v296, %v292
    %v298 = vmul.f32 %v280, %v297
    %v299 = vpack.c.bf16 %v298, %v298
    %v300 = vpack.c.bf16 %v87, %v87
    %302 = vrot.lane.b32.xlu0 %v300, 64
    %v303 = vpop.permute.xlu0 %302
    %v305 = vsel %vm117, %v299, 0
    %v308 = vsel %vm150, %v303, 0
    %310 = vmatpush.bf16.msra.mxu0 0
    %311 = vmatpush.bf16.msra.mxu0 0
    %312 = vmatpush.bf16.msra.mxu0 0
    %313 = vmatpush.bf16.msra.mxu0 0
    %314 = vmatpush.bf16.msra.mxu0 0
    %315 = vmatpush.bf16.msra.mxu0 0
    %316 = vmatpush.bf16.msra.mxu0 0
    %317 = vmatpush.bf16.msra.mxu0 %v308
    %318 = vmatmul.bf16.gmra.mxu0 %v305
    %v319 = vpop.f32.mrf.mxu0
    %v320 = vadd.f32 0.0, %v319
    %v321 = vpop.f32.mrf.mxu0
    %322 = vdwg.mxu0
    %s323 = scalar_lea.vmem [#allocation7], 8
    %324 = vst.msk [vmem:[%s323] sm:$0xff] %vm92, %v320
    %325 = vrot.lane.b32.xlu0 %v87, 112
    %v326 = vpop.permute.xlu0 %325
    %327 = vrot.lane.b32.xlu0 %v87, 80
    %v328 = vpop.permute.xlu0 %327
    %v329 = vsel %vm92, %v326, 0
    %v331 = vsel %vm92, %v328, 0
    %333 = vmatpush.xpose.msra.mxu0 0.0
    %334 = vmatpush.xpose.msra.mxu0 0.0
    %335 = vmatpush.xpose.msra.mxu0 0.0
    %336 = vmatpush.xpose.msra.mxu0 0.0
    %337 = vmatpush.xpose.msra.mxu0 0.0
    %338 = vmatpush.xpose.msra.mxu0 0.0
    %339 = vmatpush.xpose.msra.mxu0 0.0
    %340 = vmatpush.xpose.msra.mxu0 0.0
    %341 = vmatpush.xpose.msra.mxu0 0.0
    %342 = vmatpush.xpose.msra.mxu0 0.0
    %343 = vmatpush.xpose.msra.mxu0 0.0
    %344 = vmatpush.xpose.msra.mxu0 0.0
    %345 = vmatpush.xpose.msra.mxu0 0.0
    %346 = vmatpush.xpose.msra.mxu0 0.0
    %347 = vmatpush.xpose.msra.mxu0 0.0
    %348 = vmatpush.xpose.msra.mxu0 %v331
    %349 = vmatmul.f32.gmra.mxu0 %v329
    %v350 = vpop.f32.mrf.mxu0
    %v351 = vadd.f32 0.0, %v350
    %352 = vdwg.mxu0
    %v353 = vsel %vm117, %v351, -inf
    %354 = vmax.xlane.f32.xlu0 %v353
    %v355 = vpop.xlane.xlu0 %354
    %v356 = vsub.f32 %v351, %v355
    %v357 = vmul.f32 %v356, 1.442695
    %v358 = vpow.pop %v357
    %v359 = vsel %vm117, %v358, 0.0
    %360 = vadd.xlane.f32.xlu0 %v359
    %v361 = vpop.xlane.xlu0 %360
    %v362 = vrcp.pop %v361
    %v363 = vmul.f32 %v361, %v362
    %v364 = vsub.f32 1.0, %v363
    %v365 = vmul.f32 %v362, %v364
    %v366 = vadd.f32 %v362, %v365
    %vm367 = vweird.f32 %v361
    %vm368 = vweird.f32 %v362
    %vm369 = vmor %vm367, %vm368
    %v370 = vsel %vm369, %v362, %v366
    %v371 = vand.u32 2147483647, %v361
    %vm372 = vcmp.eq.f32.partialorder %v371, 8.507059e+37
    %v373 = vand.u32 %v361, 2147483648
    %v374 = vor.u32 1.1754944e-38, %v373
    %v375 = vsel %vm372, %v374, %v370
    %v376 = vmul.f32 %v358, %v375
    %v377 = vpack.c.bf16 %v376, %v376
    %378 = vrot.lane.b32.xlu0 %v300, 48
    %v379 = vpop.permute.xlu0 %378
    %v381 = vsel %vm117, %v377, 0
    %v384 = vsel %vm150, %v379, 0
    %386 = vmatpush.bf16.msra.mxu0 0
    %387 = vmatpush.bf16.msra.mxu0 0
    %388 = vmatpush.bf16.msra.mxu0 0
    %389 = vmatpush.bf16.msra.mxu0 0
    %390 = vmatpush.bf16.msra.mxu0 0
    %391 = vmatpush.bf16.msra.mxu0 0
    %392 = vmatpush.bf16.msra.mxu0 0
    %393 = vmatpush.bf16.msra.mxu0 %v384
    %394 = vmatmul.bf16.gmra.mxu0 %v381
    %v395 = vpop.f32.mrf.mxu0
    %v396 = vadd.f32 0.0, %v395
    %v397 = vpop.f32.mrf.mxu0
    %398 = vdwg.mxu0
    %400 = vrot.lane.b32.xlu0 %v396, 16
    %v401 = vpop.permute.xlu0 %400
    %403 = vst.msk [vmem:[%s323] sm:$0xff] %vm246, %v401
    // Predicated region
    $region22: #{tpu_custom_call.1} parent=1 // pred_check
      _
    $region23: #{tpu_custom_call.1} parent=1 // pred_check_branch
      %405 = sbr.rel (0) target = $region25
    $region24: #{tpu_custom_call.1} parent=1 // pred_region
      %407 = vsyncadd [#allocation4], 0
      %s408 = sshll.u32 [#allocation7], 4
      %s409 = int_to_ptr.vmem [resolvable:$true] %s408
      %s410 = sshll.u32 %s3, 4
      %s411 = int_to_ptr.hbm [resolvable:$true] %s410
      %416 = dma.vmem_to_hbm [thread:$0]  %s409, 256, %s411, [#allocation4], 128, 128, 8
    $region25: #{tpu_custom_call.1} parent=1 // pred_fallthru
      _
    // Predicated region
    $region26: #{tpu_custom_call.1} parent=1 // pred_check
      _
    $region27: #{tpu_custom_call.1} parent=1 // pred_check_branch
      %418 = sbr.rel (0) target = $region29
    $region28: #{tpu_custom_call.1} parent=1 // pred_region
      %420 = dma.done [#allocation4], 256
    $region29: #{tpu_custom_call.1} parent=1 // pred_fallthru
      _
    %421 = vsyncpa [#allocation3], 1
    %422 = vsyncpa [#allocation6], 1
    %423 = vsyncpa [#allocation4], 1

</llo_original>
